<compile_context>
chip_gen: v6e
topology: v6e:2x2x1
jax: 0.10.0
libtpu: 0.0.40
codegen_flags: <defaults>
</compile_context>

<pallas_src>
import jax
import jax.numpy as jnp
from jax.experimental import pallas as pl
from jax.experimental.pallas import tpu as pltpu

_LANE = 128
_SUBLANE = 8


def _round_up(x, m):
    return ((x + m - 1) // m) * m


def _pick_batch_tile(batch, rows_per_batch, target_rows=1024):
    """Pick the batch tile bt.

    bt*rows_per_batch stays near `target_rows` (bigger M tiles amortize the
    ~0.35us/step overhead and feed the MXU full passes).  bt is either == batch
    (single slab, no batch blocking) or a multiple of 8 so the (bt, Hp) state
    output block stays sublane-aligned; B is padded to a multiple of bt by the
    caller.  Tuning: target_rows ~2048 on v5e/v6e (128 MiB VMEM), ~1024 on v7x
    (64 MiB VMEM); on v7x also consider capping bt at ceil(B/2) so both
    TensorCores get a batch tile.
    """
    bt = max(1, target_rows // max(1, rows_per_batch))
    if bt >= batch:
        return batch
    return max(_SUBLANE, (bt // _SUBLANE) * _SUBLANE)


def prepare_encoder_decoder_params(params, lane_multiple=_LANE, v_tile=1024):
    """One-time parameter preprocessing (hoisted off the per-call path).

    Zero-pads H/V to lane multiples and casts matmul weights to bf16 once, so
    the steady-state forward never re-reads / re-writes W_out just to pad it.
    Use lane_multiple=256 on v6e/v7x when H is large (2x256^2 MXU); 128 is
    optimal on v5e and avoids inflating tiny H.
    """
    w_enc, b_enc, w_dec, w_out, b_out = params
    d_in, H = w_enc.shape
    V = w_out.shape[1]

    Hp = _round_up(H, lane_multiple)
    tv = min(_round_up(V, _LANE), v_tile)        # V tile (lane-aligned)
    Vp = _round_up(V, tv)                        # padded vocab, multiple of tv

    return dict(
        w_enc=jnp.pad(w_enc, ((0, 0), (0, Hp - H))).astype(jnp.bfloat16),
        b_enc=jnp.pad(b_enc, ((0, 0), (0, Hp - H))).astype(jnp.float32),
        w_dec=jnp.pad(w_dec, ((0, 0), (0, Hp - H))).astype(jnp.bfloat16),
        w_out=jnp.pad(w_out, ((0, Hp - H), (0, Vp - V))).astype(jnp.bfloat16),
        b_out=jnp.pad(b_out, ((0, 0), (0, Vp - V))).astype(jnp.float32),
        d_in=d_in, H=H, V=V, Hp=Hp, Vp=Vp, tv=tv,
    )


def _make_kernel(bt, s_enc, s_enc_p, s_dec_p):
    def kernel(enc_x_ref, dec_x_ref,
               w_enc_ref, b_enc_ref, w_dec_ref,
               w_out_ref, b_out_ref,
               y_ref, state_ref,
               dec_h_ref):
        hp = w_enc_ref.shape[1]

        # Encoder + decoder hidden are computed only on the first V tile; later
        # V tiles reuse dec_h from the VMEM scratch, and the state output block
        # stays resident (constant index along the 'arbitrary' V axis).
        @pl.when(pl.program_id(1) == 0)
        def _():
            # bf16 cast on the VPU (free slot) instead of a wrapper-side XLA
            # cast pass over the activations in HBM.
            enc_h = jnp.tanh(
                jnp.dot(enc_x_ref[...].astype(jnp.bfloat16), w_enc_ref[...],
                        preferred_element_type=jnp.float32)
                + b_enc_ref[...])                       # (bt*S_enc_p, Hp) f32
            enc_h = enc_h.reshape(bt, s_enc_p, hp)      # S_enc_p % 8 == 0: free
            if s_enc_p != s_enc:
                # Zero the padded sequence rows (they hold tanh(b_enc)) so the
                # mean over the true S_enc rows stays exact.
                seq = jax.lax.broadcasted_iota(jnp.int32, (bt, s_enc_p, hp), 1)
                enc_h = jnp.where(seq < s_enc, enc_h, 0.0)
            state = jnp.sum(enc_h, axis=1) * (1.0 / s_enc)      # (bt, Hp) f32

            dec_pre = jnp.dot(dec_x_ref[...].astype(jnp.bfloat16), w_dec_ref[...],
                              preferred_element_type=jnp.float32)
            dec_h = jnp.tanh(dec_pre.reshape(bt, s_dec_p, hp)
                             + state.reshape(bt, 1, hp))
            dec_h_ref[...] = dec_h.reshape(bt * s_dec_p, hp).astype(dec_h_ref.dtype)
            state_ref[...] = state                      # dense (bt, Hp) store

        # Output projection for this V tile (bf16 operands, f32 accumulate).
        y = (jnp.dot(dec_h_ref[...], w_out_ref[...],
                     preferred_element_type=jnp.float32)
             + b_out_ref[...])                          # (bt*S_dec_p, tv) f32
        y_ref[...] = y.astype(y_ref.dtype)

    return kernel


def encoder_decoder_forward(enc_x, dec_x, prepared, *,
                            target_rows=1024, y_dtype=jnp.bfloat16):
    """enc_x: (B, S_enc, D_in), dec_x: (B, S_dec, D_in), prepared: output of
    prepare_encoder_decoder_params.  Returns (Y, state) with Y in `y_dtype`
    (bf16 halves the dominant Y writeback at real vocab sizes)."""
    B, s_enc, d_in = enc_x.shape
    _, s_dec, _ = dec_x.shape
    assert d_in == prepared["d_in"]
    H, V, Hp, Vp, tv = (prepared[k] for k in ("H", "V", "Hp", "Vp", "tv"))

    # Sublane-pad the sequence lengths so in-kernel (bt*S, Hp)<->(bt, S, Hp)
    # reshapes never cross an (8,128) tile boundary (no VMEM copies).
    s_enc_p = _round_up(s_enc, _SUBLANE)
    s_dec_p = _round_up(s_dec, _SUBLANE)

    bt = _pick_batch_tile(B, max(s_enc_p, s_dec_p), target_rows)
    B_p = _round_up(B, bt)
    nb, nv = B_p // bt, Vp // tv

    # Activations stay in their input dtype (f32); the bf16 cast happens inside
    # the kernel.  Zero padding is exact (padded rows/batches are sliced off).
    enc_x2 = jnp.pad(enc_x, ((0, B_p - B), (0, s_enc_p - s_enc), (0, 0))
                     ).reshape(B_p * s_enc_p, d_in)
    dec_x2 = jnp.pad(dec_x, ((0, B_p - B), (0, s_dec_p - s_dec), (0, 0))
                     ).reshape(B_p * s_dec_p, d_in)

    in_itemsize = jnp.dtype(enc_x2.dtype).itemsize
    y_itemsize = jnp.dtype(y_dtype).itemsize

    def _resident(shape):
        # Constant block index across the whole grid -> single-buffer it: no
        # wasted VMEM on a second copy of a tile that is DMA'd exactly once.
        n = len(shape)
        return pl.BlockSpec(shape, lambda i, j, _n=n: (0,) * _n,
                            pipeline_mode=pl.Buffered(1))

    # Rough VMEM budget (double-buffered pipelined tiles, single-buffered
    # resident weights, f32/bf16 sizes); raise the scoped limit only if needed.
    vmem_est = (2 * bt * s_enc_p * d_in * in_itemsize
                + 2 * bt * s_dec_p * d_in * in_itemsize
                + 2 * d_in * Hp * 2 + Hp * 4          # W_enc, W_dec, b_enc
                + 2 * Hp * tv * 2 + 2 * tv * 4        # W_out, b_out tiles
                + 2 * bt * s_dec_p * tv * y_itemsize  # Y tile
                + 2 * bt * Hp * 4                     # state tile
                + bt * s_dec_p * Hp * 2)              # dec_h scratch
    vmem_limit = None
    if vmem_est > 16 * 1024 * 1024:
        vmem_limit = min(64 * 1024 * 1024, int(vmem_est * 1.5))

    cost = pl.CostEstimate(
        flops=int(2 * B_p * (s_enc_p * d_in * Hp + s_dec_p * d_in * Hp
                             + s_dec_p * Hp * Vp)),
        transcendentals=int(B_p * (s_enc_p + s_dec_p) * Hp),
        bytes_accessed=int(enc_x2.size * in_itemsize + dec_x2.size * in_itemsize
                           + 2 * d_in * Hp * 2 + Hp * Vp * 2 + (Hp + Vp) * 4
                           + B_p * s_dec_p * Vp * y_itemsize + B_p * Hp * 4),
    )

    y_pad, state_pad = pl.pallas_call(
        _make_kernel(bt, s_enc, s_enc_p, s_dec_p),
        out_shape=(
            jax.ShapeDtypeStruct((B_p * s_dec_p, Vp), y_dtype),
            jax.ShapeDtypeStruct((B_p, Hp), jnp.float32),
        ),
        grid_spec=pltpu.PrefetchScalarGridSpec(
            num_scalar_prefetch=0,
            grid=(nb, nv),
            in_specs=[
                pl.BlockSpec((bt * s_enc_p, d_in), lambda i, j: (i, 0)),
                pl.BlockSpec((bt * s_dec_p, d_in), lambda i, j: (i, 0)),
                _resident((d_in, Hp)),                      # W_enc
                _resident((1, Hp)),                         # b_enc
                _resident((d_in, Hp)),                      # W_dec
                pl.BlockSpec((Hp, tv), lambda i, j: (0, j)),  # W_out (V-tiled)
                pl.BlockSpec((1, tv), lambda i, j: (0, j)),   # b_out (V-tiled)
            ],
            out_specs=[
                pl.BlockSpec((bt * s_dec_p, tv), lambda i, j: (i, j)),
                pl.BlockSpec((bt, Hp), lambda i, j: (i, 0)),
            ],
            scratch_shapes=[pltpu.VMEM((bt * s_dec_p, Hp), jnp.bfloat16)],
        ),
        compiler_params=pltpu.CompilerParams(
            dimension_semantics=("parallel", "arbitrary"),
            vmem_limit_bytes=vmem_limit),
        cost_estimate=cost,
    )(enc_x2, dec_x2,
      prepared["w_enc"], prepared["b_enc"], prepared["w_dec"],
      prepared["w_out"], prepared["b_out"])

    y = y_pad.reshape(B_p, s_dec_p, Vp)[:B, :s_dec, :V]
    state = state_pad[:B, :H].reshape(B, 1, H)
    return y, state


def _reference(enc_x, dec_x, params):
    w_enc, b_enc, w_dec, w_out, b_out = params
    enc_h = jnp.tanh(enc_x @ w_enc + b_enc)
    state = jnp.mean(enc_h, axis=1, keepdims=True)
    dec_h = jnp.tanh(dec_x @ w_dec + state)
    y = dec_h @ w_out + b_out
    return y, state


if __name__ == "__main__":
    B, S_ENC, S_DEC, D_IN, H, V = 2, 8, 8, 16, 32, 16

    key = jax.random.PRNGKey(0)
    k1, k2, k3, k4, k5, k6, k7 = jax.random.split(key, 7)

    enc_x = jax.random.normal(k1, (B, S_ENC, D_IN), dtype=jnp.float32)
    dec_x = jax.random.normal(k2, (B, S_DEC, D_IN), dtype=jnp.float32)

    params = (
        jax.random.normal(k3, (D_IN, H), dtype=jnp.float32) * 0.1,  # W_enc
        jax.random.normal(k4, (1, H), dtype=jnp.float32) * 0.1,     # b_enc
        jax.random.normal(k5, (D_IN, H), dtype=jnp.float32) * 0.1,  # W_dec
        jax.random.normal(k6, (H, V), dtype=jnp.float32) * 0.1,     # W_out
        jax.random.normal(k7, (1, V), dtype=jnp.float32) * 0.1,     # b_out
    )

    # One-time parameter prep (padding + bf16 cast hoisted off the call path).
    prepared = prepare_encoder_decoder_params(params)

    y, state = encoder_decoder_forward(enc_x, dec_x, prepared)
    jax.block_until_ready((y, state))

    y_ref, state_ref = _reference(enc_x, dec_x, params)
    assert y.shape == y_ref.shape and state.shape == state_ref.shape
    # bf16 matmul operands + bf16 Y (f32 accumulation) vs an all-f32 reference.
    assert jnp.allclose(y.astype(jnp.float32), y_ref, atol=3e-2, rtol=3e-2)
    assert jnp.allclose(state, state_ref, atol=3e-2, rtol=3e-2)

    print("KERNEL_OK")
</pallas_src>

<mosaic_0001>
module attributes {stable_mosaic.version = 11 : i64} {
  func.func @kernel(%arg0: i32, %arg1: i32, %arg2: memref<16x16xf32, #tpu.memory_space<vmem>>, %arg3: memref<16x16xf32, #tpu.memory_space<vmem>>, %arg4: memref<16x128xbf16, #tpu.memory_space<vmem>>, %arg5: memref<1x128xf32, #tpu.memory_space<vmem>>, %arg6: memref<16x128xbf16, #tpu.memory_space<vmem>>, %arg7: memref<128x128xbf16, #tpu.memory_space<vmem>>, %arg8: memref<1x128xf32, #tpu.memory_space<vmem>>, %arg9: memref<16x128xbf16, #tpu.memory_space<vmem>>, %arg10: memref<2x128xf32, #tpu.memory_space<vmem>>, %arg11: memref<16x128xbf16, #tpu.memory_space<vmem>>) attributes {dimension_semantics = [#tpu.dimension_semantics<parallel>, #tpu.dimension_semantics<arbitrary>], iteration_bounds = array<i64: 1, 1>, scalar_prefetch = 0 : i64, scratch_operands = 1 : i64, tpu.core_type = #tpu.core_type<tc>, window_params = [{transform_indices = @transform_0, window_bounds = array<i64: 16, 16>}, {transform_indices = @transform_1, window_bounds = array<i64: 16, 16>}, {pipeline_mode = #tpu.pipeline_mode<synchronous>, transform_indices = @transform_2, window_bounds = array<i64: 16, 128>}, {pipeline_mode = #tpu.pipeline_mode<synchronous>, transform_indices = @transform_3, window_bounds = array<i64: 1, 128>}, {pipeline_mode = #tpu.pipeline_mode<synchronous>, transform_indices = @transform_4, window_bounds = array<i64: 16, 128>}, {transform_indices = @transform_5, window_bounds = array<i64: 128, 128>}, {transform_indices = @transform_6, window_bounds = array<i64: 1, 128>}, {transform_indices = @transform_7, window_bounds = array<i64: 16, 128>}, {transform_indices = @transform_8, window_bounds = array<i64: 2, 128>}]} {
    %c0_i32 = arith.constant 0 : i32
    %0 = arith.cmpi eq, %arg1, %c0_i32 : i32
    %1 = arith.extui %0 : i1 to i32
    %c0_i32_0 = arith.constant 0 : i32
    %2 = arith.cmpi ne, %1, %c0_i32_0 : i32
    scf.if %2 {
      %c0_8 = arith.constant 0 : index
      %c0_9 = arith.constant 0 : index
      %11 = vector.load %arg2[%c0_8, %c0_9] : memref<16x16xf32, #tpu.memory_space<vmem>>, vector<16x16xf32>
      %12 = arith.truncf %11 : vector<16x16xf32> to vector<16x16xbf16>
      %c0_10 = arith.constant 0 : index
      %c0_11 = arith.constant 0 : index
      %13 = vector.load %arg4[%c0_10, %c0_11] : memref<16x128xbf16, #tpu.memory_space<vmem>>, vector<16x128xbf16>
      %cst_12 = arith.constant dense<0.000000e+00> : vector<16x128xf32>
      %14 = tpu.matmul %12, %13, %cst_12 {dimension_numbers = #tpu.dot_dimension_numbers<[1], [0], [0], [1], [0, 0, 1, 1], [], []>} : vector<16x16xbf16>, vector<16x128xbf16>, vector<16x128xf32> -> vector<16x128xf32>
      %c0_13 = arith.constant 0 : index
      %c0_14 = arith.constant 0 : index
      %15 = vector.load %arg5[%c0_13, %c0_14] : memref<1x128xf32, #tpu.memory_space<vmem>>, vector<1x128xf32>
      %16 = vector.broadcast %15 : vector<1x128xf32> to vector<16x128xf32>
      %17 = arith.addf %14, %16 : vector<16x128xf32>
      %18 = math.tanh %17 : vector<16x128xf32>
      %19 = vector.shape_cast %18 : vector<16x128xf32> to vector<2x8x128xf32>
      %cst_15 = arith.constant dense<0.000000e+00> : vector<2x128xf32>
      %20 = vector.multi_reduction <add>, %19, %cst_15 [1] : vector<2x8x128xf32> to vector<2x128xf32>
      %cst_16 = arith.constant 1.250000e-01 : f32
      %21 = vector.broadcast %cst_16 : f32 to vector<2x128xf32>
      %22 = arith.mulf %20, %21 : vector<2x128xf32>
      %c0_17 = arith.constant 0 : index
      %c0_18 = arith.constant 0 : index
      %23 = vector.load %arg3[%c0_17, %c0_18] : memref<16x16xf32, #tpu.memory_space<vmem>>, vector<16x16xf32>
      %24 = arith.truncf %23 : vector<16x16xf32> to vector<16x16xbf16>
      %c0_19 = arith.constant 0 : index
      %c0_20 = arith.constant 0 : index
      %25 = vector.load %arg6[%c0_19, %c0_20] : memref<16x128xbf16, #tpu.memory_space<vmem>>, vector<16x128xbf16>
      %cst_21 = arith.constant dense<0.000000e+00> : vector<16x128xf32>
      %26 = tpu.matmul %24, %25, %cst_21 {dimension_numbers = #tpu.dot_dimension_numbers<[1], [0], [0], [1], [0, 0, 1, 1], [], []>} : vector<16x16xbf16>, vector<16x128xbf16>, vector<16x128xf32> -> vector<16x128xf32>
      %27 = vector.shape_cast %26 : vector<16x128xf32> to vector<2x8x128xf32>
      %28 = vector.shape_cast %22 : vector<2x128xf32> to vector<2x1x128xf32>
      %29 = vector.broadcast %28 : vector<2x1x128xf32> to vector<2x8x128xf32>
      %30 = arith.addf %27, %29 : vector<2x8x128xf32>
      %31 = math.tanh %30 : vector<2x8x128xf32>
      %32 = vector.shape_cast %31 : vector<2x8x128xf32> to vector<16x128xf32>
      %33 = arith.truncf %32 : vector<16x128xf32> to vector<16x128xbf16>
      %c0_22 = arith.constant 0 : index
      %c0_23 = arith.constant 0 : index
      %34 = vector.load %arg11[%c0_22, %c0_23] : memref<16x128xbf16, #tpu.memory_space<vmem>>, vector<16x128xbf16>
      tpu.vector_store %arg11[%c0_22, %c0_23], %33 {strides = array<i32>} : memref<16x128xbf16, #tpu.memory_space<vmem>>, vector<16x128xbf16>,
      %c0_24 = arith.constant 0 : index
      %c0_25 = arith.constant 0 : index
      %35 = vector.load %arg10[%c0_24, %c0_25] : memref<2x128xf32, #tpu.memory_space<vmem>>, vector<2x128xf32>
      tpu.vector_store %arg10[%c0_24, %c0_25], %22 {strides = array<i32>} : memref<2x128xf32, #tpu.memory_space<vmem>>, vector<2x128xf32>,
    } else {
    }
    %c0 = arith.constant 0 : index
    %c0_1 = arith.constant 0 : index
    %3 = vector.load %arg11[%c0, %c0_1] : memref<16x128xbf16, #tpu.memory_space<vmem>>, vector<16x128xbf16>
    %c0_2 = arith.constant 0 : index
    %c0_3 = arith.constant 0 : index
    %4 = vector.load %arg7[%c0_2, %c0_3] : memref<128x128xbf16, #tpu.memory_space<vmem>>, vector<128x128xbf16>
    %cst = arith.constant dense<0.000000e+00> : vector<16x128xf32>
    %5 = tpu.matmul %3, %4, %cst {dimension_numbers = #tpu.dot_dimension_numbers<[1], [0], [0], [1], [0, 0, 1, 1], [], []>} : vector<16x128xbf16>, vector<128x128xbf16>, vector<16x128xf32> -> vector<16x128xf32>
    %c0_4 = arith.constant 0 : index
    %c0_5 = arith.constant 0 : index
    %6 = vector.load %arg8[%c0_4, %c0_5] : memref<1x128xf32, #tpu.memory_space<vmem>>, vector<1x128xf32>
    %7 = vector.broadcast %6 : vector<1x128xf32> to vector<16x128xf32>
    %8 = arith.addf %5, %7 : vector<16x128xf32>
    %9 = arith.truncf %8 : vector<16x128xf32> to vector<16x128xbf16>
    %c0_6 = arith.constant 0 : index
    %c0_7 = arith.constant 0 : index
    %10 = vector.load %arg9[%c0_6, %c0_7] : memref<16x128xbf16, #tpu.memory_space<vmem>>, vector<16x128xbf16>
    tpu.vector_store %arg9[%c0_6, %c0_7], %9 {strides = array<i32>} : memref<16x128xbf16, #tpu.memory_space<vmem>>, vector<16x128xbf16>,
    return
  }
  func.func @transform_0(%arg0: i32, %arg1: i32) -> (i32, i32) {
    %c0_i32 = arith.constant 0 : i32
    %c0_i32_0 = arith.constant 0 : i32
    return %arg0, %c0_i32 : i32, i32
  }
  func.func @transform_1(%arg0: i32, %arg1: i32) -> (i32, i32) {
    %c0_i32 = arith.constant 0 : i32
    %c0_i32_0 = arith.constant 0 : i32
    return %arg0, %c0_i32 : i32, i32
  }
  func.func @transform_2(%arg0: i32, %arg1: i32) -> (i32, i32) {
    %c0_i32 = arith.constant 0 : i32
    %c0_i32_0 = arith.constant 0 : i32
    %c0_i32_1 = arith.constant 0 : i32
    return %c0_i32, %c0_i32_0 : i32, i32
  }
  func.func @transform_3(%arg0: i32, %arg1: i32) -> (i32, i32) {
    %c0_i32 = arith.constant 0 : i32
    %c0_i32_0 = arith.constant 0 : i32
    %c0_i32_1 = arith.constant 0 : i32
    return %c0_i32, %c0_i32_0 : i32, i32
  }
  func.func @transform_4(%arg0: i32, %arg1: i32) -> (i32, i32) {
    %c0_i32 = arith.constant 0 : i32
    %c0_i32_0 = arith.constant 0 : i32
    %c0_i32_1 = arith.constant 0 : i32
    return %c0_i32, %c0_i32_0 : i32, i32
  }
  func.func @transform_5(%arg0: i32, %arg1: i32) -> (i32, i32) {
    %c0_i32 = arith.constant 0 : i32
    %c0_i32_0 = arith.constant 0 : i32
    return %c0_i32, %arg1 : i32, i32
  }
  func.func @transform_6(%arg0: i32, %arg1: i32) -> (i32, i32) {
    %c0_i32 = arith.constant 0 : i32
    %c0_i32_0 = arith.constant 0 : i32
    return %c0_i32, %arg1 : i32, i32
  }
  func.func @transform_7(%arg0: i32, %arg1: i32) -> (i32, i32) {
    %c0_i32 = arith.constant 0 : i32
    return %arg0, %arg1 : i32, i32
  }
  func.func @transform_8(%arg0: i32, %arg1: i32) -> (i32, i32) {
    %c0_i32 = arith.constant 0 : i32
    %c0_i32_0 = arith.constant 0 : i32
    return %arg0, %c0_i32 : i32, i32
  }
}

</mosaic_0001>

<llo_original>
// kernel: tpu_custom_call.1
$region0: #{tpu_custom_call.1}
  #allocation0 [shape = 'u32[]', space=smem, size = 0x4, offset = 0x4, fixed_abs, tag = 'smem constant byte address 0x4 - core index']
  #allocation1 [shape = 'u32[144,128]{1,0:T(1,128)}', space=vmem, size = 0x12000, scoped, tag = 'internal scratch']
  #allocation2 [shape = 'bf16[16,128]{1,0:T(8,128)(2,1)}', space=vmem, size = 0x1000, scoped, tag = 'scratch operand']
  %s0 = inlined_call_operand.hbm [shape: f32[16,16], index: 0, kind: input, shape index: {}]
  %s1 = inlined_call_operand.hbm [shape: f32[16,16], index: 1, kind: input, shape index: {}]
  %s2 = inlined_call_operand.hbm [shape: bf16[16,128], index: 2, kind: input, shape index: {}]
  %s3 = inlined_call_operand.vmem [shape: f32[1,128], index: 3, kind: input, shape index: {}]
  %s4 = inlined_call_operand.hbm [shape: bf16[16,128], index: 4, kind: input, shape index: {}]
  %s5 = inlined_call_operand.hbm [shape: bf16[128,128], index: 5, kind: input, shape index: {}]
  %s6 = inlined_call_operand.vmem [shape: f32[1,128], index: 6, kind: input, shape index: {}]
  %s7 = inlined_call_operand.hbm [shape: bf16[16,128], index: 7, kind: output, shape index: {0}]
  %s8 = inlined_call_operand.hbm [shape: f32[2,128], index: 8, kind: output, shape index: {1}]
  %9 = xla_tuple %s7, %s8
  %s10 = sld [smem:[#allocation0]]
  $region70: #{tpu_custom_call.1} parent=0
    _
  %s12 = ssub.s32 1, %s10
  %s13 = scalar_select 0, %s12, %s10
  $region1: #{tpu_custom_call.1} parent=0
    #allocation3 [shape = 'u8[8192]{0}', space=vmem, size = 0x2000, scoped, tag = 'input window, operand 0, single buffered']
    #allocation4 [shape = 's32[1]{0}', space=sflag, size = 0x4, scoped, tag = 'scoped memory for tpu_custom_call.1']
    #allocation5 [shape = 's32[1]{0}', space=sflag, size = 0x4, scoped, tag = 'scoped memory for tpu_custom_call.1']
    #allocation6 [shape = 'u8[8192]{0}', space=vmem, size = 0x2000, scoped, tag = 'input window, operand 1, single buffered']
    #allocation7 [shape = 's32[1]{0}', space=sflag, size = 0x4, scoped, tag = 'scoped memory for tpu_custom_call.1']
    #allocation8 [shape = 'u8[4096]{0}', space=vmem, size = 0x1000, scoped, tag = 'input window, operand 2, single buffered']
    #allocation9 [shape = 'u8[4096]{0}', space=vmem, size = 0x1000, scoped, tag = 'input window, operand 4, single buffered']
    #allocation10 [shape = 's32[1]{0}', space=sflag, size = 0x4, scoped, tag = 'scoped memory for tpu_custom_call.1']
    #allocation11 [shape = 'u8[32768]{0}', space=vmem, size = 0x8000, scoped, tag = 'input window, operand 5, single buffered']
    #allocation12 [shape = 'u8[4096]{0}', space=vmem, size = 0x1000, scoped, tag = 'output window, operand 0, single buffered']
    #allocation13 [shape = 'u8[1024]{0}', space=vmem, size = 0x400, scoped, tag = 'output window, operand 1, single buffered']
    #allocation14 [shape = 's32[1]{0}', space=sflag, size = 0x4, scoped, tag = 'scoped memory for tpu_custom_call.1']
    %14 = vsyncpa [#allocation4], 0
    %15 = vsyncpa [#allocation7], 0
    %16 = vsyncpa [#allocation10], 0
    %17 = vsyncpa [#allocation5], 0
    %18 = vsyncpa [#allocation14], 0
    // Predicated region
    $region2: #{tpu_custom_call.1} parent=1 // pred_check
      _
    $region3: #{tpu_custom_call.1} parent=1 // pred_check_branch
      %20 = sbr.rel (0) target = $region5
    $region4: #{tpu_custom_call.1} parent=1 // pred_region
      %s22 = ssub.s32 256, 256
      %23 = vsyncadd [#allocation4], %s22
      %s24 = sshll.u32 [#allocation3], 4
      %s25 = int_to_ptr.vmem [resolvable:$true] %s24
      %30 = dma.hbm_to_vmem [thread:$0]  %s0, 256, %s25, [#allocation4], 128, 128, 8
    $region5: #{tpu_custom_call.1} parent=1 // pred_fallthru
      _
    // Predicated region
    $region6: #{tpu_custom_call.1} parent=1 // pred_check
      _
    $region7: #{tpu_custom_call.1} parent=1 // pred_check_branch
      %32 = sbr.rel (0) target = $region9
    $region8: #{tpu_custom_call.1} parent=1 // pred_region
      %s34 = ssub.s32 256, 256
      %35 = vsyncadd [#allocation7], %s34
      %s36 = sshll.u32 [#allocation6], 4
      %s37 = int_to_ptr.vmem [resolvable:$true] %s36
      %42 = dma.hbm_to_vmem [thread:$0]  %s1, 256, %s37, [#allocation7], 128, 128, 8
    $region9: #{tpu_custom_call.1} parent=1 // pred_fallthru
      _
    // Predicated region
    $region10: #{tpu_custom_call.1} parent=1 // pred_check
      _
    $region11: #{tpu_custom_call.1} parent=1 // pred_check_branch
      %44 = sbr.rel (0) target = $region13
    $region12: #{tpu_custom_call.1} parent=1 // pred_region
      %s46 = ssub.s32 128, 128
      %47 = vsyncadd [#allocation7], %s46
      %s48 = sshll.u32 [#allocation8], 4
      %s49 = int_to_ptr.vmem [resolvable:$true] %s48
      %54 = dma.hbm_to_vmem [thread:$0]  %s2, 128, %s49, [#allocation7], 64, 64, 4
    $region13: #{tpu_custom_call.1} parent=1 // pred_fallthru
      _
    // Predicated region
    $region14: #{tpu_custom_call.1} parent=1 // pred_check
      _
    $region15: #{tpu_custom_call.1} parent=1 // pred_check_branch
      %56 = sbr.rel (0) target = $region17
    $region16: #{tpu_custom_call.1} parent=1 // pred_region
      _
    $region17: #{tpu_custom_call.1} parent=1 // pred_fallthru
      _
    // Predicated region
    $region18: #{tpu_custom_call.1} parent=1 // pred_check
      _
    $region19: #{tpu_custom_call.1} parent=1 // pred_check_branch
      %58 = sbr.rel (0) target = $region21
    $region20: #{tpu_custom_call.1} parent=1 // pred_region
      %s60 = ssub.s32 128, 128
      %61 = vsyncadd [#allocation10], %s60
      %s62 = sshll.u32 [#allocation9], 4
      %s63 = int_to_ptr.vmem [resolvable:$true] %s62
      %68 = dma.hbm_to_vmem [thread:$0]  %s4, 128, %s63, [#allocation10], 64, 64, 4
    $region21: #{tpu_custom_call.1} parent=1 // pred_fallthru
      _
    // Predicated region
    $region22: #{tpu_custom_call.1} parent=1 // pred_check
      _
    $region23: #{tpu_custom_call.1} parent=1 // pred_check_branch
      %70 = sbr.rel (0) target = $region25
    $region24: #{tpu_custom_call.1} parent=1 // pred_region
      %s72 = ssub.s32 1024, 1024
      %73 = vsyncadd [#allocation10], %s72
      %s74 = sshll.u32 [#allocation11], 4
      %s75 = int_to_ptr.vmem [resolvable:$true] %s74
      %80 = dma.hbm_to_vmem [thread:$0]  %s5, 1024, %s75, [#allocation10], 64, 64, 4
    $region25: #{tpu_custom_call.1} parent=1 // pred_fallthru
      _
    // Predicated region
    $region26: #{tpu_custom_call.1} parent=1 // pred_check
      _
    $region27: #{tpu_custom_call.1} parent=1 // pred_check_branch
      %82 = sbr.rel (0) target = $region29
    $region28: #{tpu_custom_call.1} parent=1 // pred_region
      _
    $region29: #{tpu_custom_call.1} parent=1 // pred_fallthru
      _
    // Predicated region
    $region30: #{tpu_custom_call.1} parent=1 // pred_check
      _
    $region31: #{tpu_custom_call.1} parent=1 // pred_check_branch
      %84 = sbr.rel (0) target = $region33
    $region32: #{tpu_custom_call.1} parent=1 // pred_region
      %85 = dma.done [#allocation4], 256
    $region33: #{tpu_custom_call.1} parent=1 // pred_fallthru
      _
    // Predicated region
    $region34: #{tpu_custom_call.1} parent=1 // pred_check
      _
    $region35: #{tpu_custom_call.1} parent=1 // pred_check_branch
      %87 = sbr.rel (0) target = $region37
    $region36: #{tpu_custom_call.1} parent=1 // pred_region
      %88 = dma.done [#allocation7], 256
    $region37: #{tpu_custom_call.1} parent=1 // pred_fallthru
      _
    // Predicated region
    $region38: #{tpu_custom_call.1} parent=1 // pred_check
      _
    $region39: #{tpu_custom_call.1} parent=1 // pred_check_branch
      %90 = sbr.rel (0) target = $region41
    $region40: #{tpu_custom_call.1} parent=1 // pred_region
      %91 = dma.done [#allocation7], 128
    $region41: #{tpu_custom_call.1} parent=1 // pred_fallthru
      _
    // Predicated region
    $region42: #{tpu_custom_call.1} parent=1 // pred_check
      _
    $region43: #{tpu_custom_call.1} parent=1 // pred_check_branch
      %93 = sbr.rel (0) target = $region45
    $region44: #{tpu_custom_call.1} parent=1 // pred_region
      %94 = dma.done [#allocation10], 128
    $region45: #{tpu_custom_call.1} parent=1 // pred_fallthru
      _
    // Predicated region
    $region46: #{tpu_custom_call.1} parent=1 // pred_check
      _
    $region47: #{tpu_custom_call.1} parent=1 // pred_check_branch
      %96 = sbr.rel (0) target = $region49
    $region48: #{tpu_custom_call.1} parent=1 // pred_region
      %97 = dma.done [#allocation10], 1024
    $region49: #{tpu_custom_call.1} parent=1 // pred_fallthru
      _
    %p99 = scmp.eq.s32.totalorder 0, 0
    // Predicated region
    $region50: #{tpu_custom_call.1} parent=1 // pred_check
      %p100 = pneg %p99
    $region51: #{tpu_custom_call.1} parent=1 // pred_check_branch
      %102 = sbr.rel (%p100) target = $region53
    $region52: #{tpu_custom_call.1} parent=1 // pred_region
      %v103 = vld [vmem:[#allocation3] sm:$0xff]
      %v104 = vld [vmem:[#allocation3 + $0x8] sm:$0xff]
      %v105 = vpack.c.bf16 %v104, %v103
      %v106 = vld [vmem:[#allocation8] sm:$0xf]
      %v107 = vld [vmem:[#allocation8 + $0x4] sm:$0xf]
      %v108 = vld [vmem:[%s3] sm:$0x1]
      %v110 = vlaneseq
      %v111 = vshrl.u32 %v110, 7
      %v112 = vsub.s32 0, %v111
      %v113 = vrot.slane %v108, %v112
      %v117 = vunpack.c.l.b16 %v106
      %v118 = vunpack.c.l.b16 %v107
      %v119 = vpack.c.b16 %v118, %v117
      %vm121 = vcmask 130048
      %v123 = vsel %vm121, %v105, 0
      %125 = vmatprep.subr.bf16.mxu0 0
      %126 = vmatpush1.bf16.msra.mxu0 0
      %127 = vmatprep.subr.bf16.mxu0 0
      %128 = vmatpush1.bf16.msra.mxu0 0
      %129 = vmatprep.subr.bf16.mxu0 0
      %130 = vmatpush1.bf16.msra.mxu0 0
      %131 = vmatprep.subr.bf16.mxu0 0
      %132 = vmatpush1.bf16.msra.mxu0 0
      %133 = vmatprep.subr.bf16.mxu0 0
      %134 = vmatpush1.bf16.msra.mxu0 0
      %135 = vmatprep.subr.bf16.mxu0 0
      %136 = vmatpush1.bf16.msra.mxu0 0
      %137 = vmatprep.subr.bf16.mxu0 0
      %138 = vmatpush1.bf16.msra.mxu0 0
      %139 = vmatprep.subr.bf16.mxu0 0
      %140 = vmatpush1.bf16.msra.mxu0 %v119
      %141 = vmatprep.subr.bf16.mxu0 0
      %142 = vmatpush2.bf16.msra.mxu0 0
      %143 = vmatprep.subr.bf16.mxu0 0
      %144 = vmatpush2.bf16.msra.mxu0 0
      %145 = vmatprep.subr.bf16.mxu0 0
      %146 = vmatpush2.bf16.msra.mxu0 0
      %147 = vmatprep.subr.bf16.mxu0 0
      %148 = vmatpush2.bf16.msra.mxu0 0
      %149 = vmatprep.subr.bf16.mxu0 0
      %150 = vmatpush2.bf16.msra.mxu0 0
      %151 = vmatprep.subr.bf16.mxu0 0
      %152 = vmatpush2.bf16.msra.mxu0 0
      %153 = vmatprep.subr.bf16.mxu0 0
      %154 = vmatpush2.bf16.msra.mxu0 0
      %155 = vmatprep.subr.bf16.mxu0 0
      %156 = vmatpush2.bf16.msra.mxu0 0
      %157 = vmatprep.mubr.bf16.mxu0 0
      %158 = vmatmul.mubr.bf16.gmra.mxu0 %v123
      %v159 = vpop.f32.mrf.mxu0
      %v160 = vadd.f32 %v113, %v159
      %v161 = vpop.f32.mrf.mxu0
      %v162 = vpop.f32.mrf.mxu0
      %v163 = vadd.f32 %v113, %v162
      %v164 = vpop.f32.mrf.mxu0
      %165 = vdwg.mxu0
      %v166 = vtanh.pop %v160
      %v167 = vtanh.pop %v163
      %v168 = vrot.slane %v166, 4
      %v169 = vadd.f32 %v166, %v168
      %v170 = vrot.slane %v169, 2
      %v171 = vadd.f32 %v169, %v170
      %v172 = vrot.slane %v171, 1
      %v173 = vadd.f32 %v171, %v172
      %v174 = vrot.slane %v167, 4
      %v175 = vadd.f32 %v167, %v174
      %v176 = vrot.slane %v175, 2
      %v177 = vadd.f32 %v175, %v176
      %v178 = vrot.slane %v177, 1
      %v179 = vadd.f32 %v177, %v178
      %v180 = vmul.f32 %v173, 0.125
      %v181 = vmul.f32 %v179, 0.125
      %v182 = vld [vmem:[#allocation6] sm:$0xff]
      %v183 = vld [vmem:[#allocation6 + $0x8] sm:$0xff]
      %v184 = vpack.c.bf16 %v183, %v182
      %v185 = vld [vmem:[#allocation9] sm:$0xf]
      %v186 = vld [vmem:[#allocation9 + $0x4] sm:$0xf]
      %v189 = vunpack.c.l.b16 %v185
      %v190 = vunpack.c.l.b16 %v186
      %v191 = vpack.c.b16 %v190, %v189
      %v194 = vsel %vm121, %v184, 0
      %196 = vmatprep.subr.bf16.mxu0 0
      %197 = vmatpush1.bf16.msra.mxu0 0
      %198 = vmatprep.subr.bf16.mxu0 0
      %199 = vmatpush1.bf16.msra.mxu0 0
      %200 = vmatprep.subr.bf16.mxu0 0
      %201 = vmatpush1.bf16.msra.mxu0 0
      %202 = vmatprep.subr.bf16.mxu0 0
      %203 = vmatpush1.bf16.msra.mxu0 0
      %204 = vmatprep.subr.bf16.mxu0 0
      %205 = vmatpush1.bf16.msra.mxu0 0
      %206 = vmatprep.subr.bf16.mxu0 0
      %207 = vmatpush1.bf16.msra.mxu0 0
      %208 = vmatprep.subr.bf16.mxu0 0
      %209 = vmatpush1.bf16.msra.mxu0 0
      %210 = vmatprep.subr.bf16.mxu0 0
      %211 = vmatpush1.bf16.msra.mxu0 %v191
      %212 = vmatprep.subr.bf16.mxu0 0
      %213 = vmatpush2.bf16.msra.mxu0 0
      %214 = vmatprep.subr.bf16.mxu0 0
      %215 = vmatpush2.bf16.msra.mxu0 0
      %216 = vmatprep.subr.bf16.mxu0 0
      %217 = vmatpush2.bf16.msra.mxu0 0
      %218 = vmatprep.subr.bf16.mxu0 0
      %219 = vmatpush2.bf16.msra.mxu0 0
      %220 = vmatprep.subr.bf16.mxu0 0
      %221 = vmatpush2.bf16.msra.mxu0 0
      %222 = vmatprep.subr.bf16.mxu0 0
      %223 = vmatpush2.bf16.msra.mxu0 0
      %224 = vmatprep.subr.bf16.mxu0 0
      %225 = vmatpush2.bf16.msra.mxu0 0
      %226 = vmatprep.subr.bf16.mxu0 0
      %227 = vmatpush2.bf16.msra.mxu0 0
      %228 = vmatprep.mubr.bf16.mxu0 0
      %229 = vmatmul.mubr.bf16.gmra.mxu0 %v194
      %v230 = vpop.f32.mrf.mxu0
      %v231 = vadd.f32 0.0, %v230
      %v232 = vpop.f32.mrf.mxu0
      %v233 = vpop.f32.mrf.mxu0
      %v234 = vadd.f32 0.0, %v233
      %v235 = vpop.f32.mrf.mxu0
      %236 = vdwg.mxu0
      %v237 = vadd.f32 %v231, %v180
      %v238 = vadd.f32 %v234, %v181
      %v239 = vtanh.pop %v237
      %v240 = vtanh.pop %v238
      %v241 = vpack.c.bf16 %v240, %v239
      %v243 = vunpack.c.l.b16 %v241
      %v244 = vunpack.c.h.b16 %v241
      %v245 = vpack.c.b16 %v243, %v243
      %v246 = vpack.c.b16 %v244, %v244
      %249 = vst [vmem:[#allocation2] sm:$0xf] %v245
      %250 = vst [vmem:[#allocation2 + $0x4] sm:$0xf] %v246
      %vm253 = vcmask 1041409
      %v254 = vsel %vm253, %v181, %v180
      %256 = vst [vmem:[#allocation13] sm:$0x3] %v254
    $region53: #{tpu_custom_call.1} parent=1 // pred_fallthru
      _
    %v257 = vld [vmem:[#allocation2] sm:$0xf]
    %v258 = vld [vmem:[#allocation2 + $0x4] sm:$0xf]
    %v259 = vld [vmem:[#allocation11] sm:$0xf]
    %v260 = vld [vmem:[#allocation11 + $0x4] sm:$0xf]
    %v261 = vld [vmem:[#allocation11 + $0x8] sm:$0xf]
    %v262 = vld [vmem:[#allocation11 + $0xc] sm:$0xf]
    %v263 = vld [vmem:[#allocation11 + $0x10] sm:$0xf]
    %v264 = vld [vmem:[#allocation11 + $0x14] sm:$0xf]
    %v265 = vld [vmem:[#allocation11 + $0x18] sm:$0xf]
    %v266 = vld [vmem:[#allocation11 + $0x1c] sm:$0xf]
    %v267 = vld [vmem:[#allocation11 + $0x20] sm:$0xf]
    %v268 = vld [vmem:[#allocation11 + $0x24] sm:$0xf]
    %v269 = vld [vmem:[#allocation11 + $0x28] sm:$0xf]
    %v270 = vld [vmem:[#allocation11 + $0x2c] sm:$0xf]
    %v271 = vld [vmem:[#allocation11 + $0x30] sm:$0xf]
    %v272 = vld [vmem:[#allocation11 + $0x34] sm:$0xf]
    %v273 = vld [vmem:[#allocation11 + $0x38] sm:$0xf]
    %v274 = vld [vmem:[#allocation11 + $0x3c] sm:$0xf]
    %v275 = vld [vmem:[%s6] sm:$0x1]
    %v277 = vlaneseq
    %v278 = vshrl.u32 %v277, 7
    %v279 = vsub.s32 0, %v278
    %v280 = vrot.slane %v275, %v279
    %v284 = vunpack.c.l.b16 %v257
    %v285 = vunpack.c.l.b16 %v258
    %v286 = vpack.c.b16 %v285, %v284
    %v304 = vunpack.c.l.b16 %v259
    %v305 = vunpack.c.l.b16 %v260
    %v306 = vunpack.c.l.b16 %v261
    %v307 = vunpack.c.l.b16 %v262
    %v308 = vunpack.c.l.b16 %v263
    %v309 = vunpack.c.l.b16 %v264
    %v310 = vunpack.c.l.b16 %v265
    %v311 = vunpack.c.l.b16 %v266
    %v312 = vunpack.c.l.b16 %v267
    %v313 = vunpack.c.l.b16 %v268
    %v314 = vunpack.c.l.b16 %v269
    %v315 = vunpack.c.l.b16 %v270
    %v316 = vunpack.c.l.b16 %v271
    %v317 = vunpack.c.l.b16 %v272
    %v318 = vunpack.c.l.b16 %v273
    %v319 = vunpack.c.l.b16 %v274
    %v320 = vpack.c.b16 %v305, %v304
    %v321 = vpack.c.b16 %v307, %v306
    %v322 = vpack.c.b16 %v309, %v308
    %v323 = vpack.c.b16 %v311, %v310
    %v324 = vpack.c.b16 %v313, %v312
    %v325 = vpack.c.b16 %v315, %v314
    %v326 = vpack.c.b16 %v317, %v316
    %v327 = vpack.c.b16 %v319, %v318
    %336 = vmatprep.subr.bf16.mxu0 0
    %337 = vmatpush1.bf16.msra.mxu0 %v327
    %338 = vmatprep.subr.bf16.mxu0 0
    %339 = vmatpush1.bf16.msra.mxu0 %v326
    %340 = vmatprep.subr.bf16.mxu0 0
    %341 = vmatpush1.bf16.msra.mxu0 %v325
    %342 = vmatprep.subr.bf16.mxu0 0
    %343 = vmatpush1.bf16.msra.mxu0 %v324
    %344 = vmatprep.subr.bf16.mxu0 0
    %345 = vmatpush1.bf16.msra.mxu0 %v323
    %346 = vmatprep.subr.bf16.mxu0 0
    %347 = vmatpush1.bf16.msra.mxu0 %v322
    %348 = vmatprep.subr.bf16.mxu0 0
    %349 = vmatpush1.bf16.msra.mxu0 %v321
    %350 = vmatprep.subr.bf16.mxu0 0
    %351 = vmatpush1.bf16.msra.mxu0 %v320
    %352 = vmatprep.subr.bf16.mxu0 0
    %353 = vmatpush2.bf16.msra.mxu0 0
    %354 = vmatprep.subr.bf16.mxu0 0
    %355 = vmatpush2.bf16.msra.mxu0 0
    %356 = vmatprep.subr.bf16.mxu0 0
    %357 = vmatpush2.bf16.msra.mxu0 0
    %358 = vmatprep.subr.bf16.mxu0 0
    %359 = vmatpush2.bf16.msra.mxu0 0
    %360 = vmatprep.subr.bf16.mxu0 0
    %361 = vmatpush2.bf16.msra.mxu0 0
    %362 = vmatprep.subr.bf16.mxu0 0
    %363 = vmatpush2.bf16.msra.mxu0 0
    %364 = vmatprep.subr.bf16.mxu0 0
    %365 = vmatpush2.bf16.msra.mxu0 0
    %366 = vmatprep.subr.bf16.mxu0 0
    %367 = vmatpush2.bf16.msra.mxu0 0
    %368 = vmatprep.mubr.bf16.mxu0 0
    %369 = vmatmul.mubr.bf16.gmra.mxu0 %v286
    %v370 = vpop.f32.mrf.mxu0
    %v371 = vadd.f32 %v280, %v370
    %v372 = vpop.f32.mrf.mxu0
    %v373 = vpop.f32.mrf.mxu0
    %v374 = vadd.f32 %v280, %v373
    %v375 = vpop.f32.mrf.mxu0
    %376 = vdwg.mxu0
    %v377 = vpack.c.bf16 %v374, %v371
    %v379 = vunpack.c.l.b16 %v377
    %v380 = vunpack.c.h.b16 %v377
    %v381 = vpack.c.b16 %v379, %v379
    %v382 = vpack.c.b16 %v380, %v380
    %385 = vst [vmem:[#allocation12] sm:$0xf] %v381
    %386 = vst [vmem:[#allocation12 + $0x4] sm:$0xf] %v382
    // Predicated region
    $region54: #{tpu_custom_call.1} parent=1 // pred_check
      _
    $region55: #{tpu_custom_call.1} parent=1 // pred_check_branch
      %388 = sbr.rel (0) target = $region57
    $region56: #{tpu_custom_call.1} parent=1 // pred_region
      %s390 = ssub.s32 128, 128
      %391 = vsyncadd [#allocation5], %s390
      %s392 = sshll.u32 [#allocation12], 4
      %s393 = int_to_ptr.vmem [resolvable:$true] %s392
      %398 = dma.vmem_to_hbm [thread:$0]  %s393, 128, %s7, [#allocation5], 64, 64, 4
    $region57: #{tpu_custom_call.1} parent=1 // pred_fallthru
      _
    // Predicated region
    $region58: #{tpu_custom_call.1} parent=1 // pred_check
      _
    $region59: #{tpu_custom_call.1} parent=1 // pred_check_branch
      %400 = sbr.rel (0) target = $region61
    $region60: #{tpu_custom_call.1} parent=1 // pred_region
      %s402 = ssub.s32 32, 32
      %403 = vsyncadd [#allocation14], %s402
      %s405 = sshll.u32 [#allocation13], 4
      %s406 = int_to_ptr.vmem [resolvable:$true] %s405
      %408 = dma.vmem_to_hbm [thread:$0]  %s406, 32, %s8, [#allocation14]
    $region61: #{tpu_custom_call.1} parent=1 // pred_fallthru
      _
    // Predicated region
    $region62: #{tpu_custom_call.1} parent=1 // pred_check
      _
    $region63: #{tpu_custom_call.1} parent=1 // pred_check_branch
      %410 = sbr.rel (0) target = $region65
    $region64: #{tpu_custom_call.1} parent=1 // pred_region
      %411 = dma.done [#allocation5], 128
    $region65: #{tpu_custom_call.1} parent=1 // pred_fallthru
      _
    // Predicated region
    $region66: #{tpu_custom_call.1} parent=1 // pred_check
      _
    $region67: #{tpu_custom_call.1} parent=1 // pred_check_branch
      %413 = sbr.rel (0) target = $region69
    $region68: #{tpu_custom_call.1} parent=1 // pred_region
      %414 = dma.done [#allocation14], 32
    $region69: #{tpu_custom_call.1} parent=1 // pred_fallthru
      _
    %415 = vsyncpa [#allocation4], 1
    %416 = vsyncpa [#allocation7], 1
    %417 = vsyncpa [#allocation10], 1
    %418 = vsyncpa [#allocation5], 1
    %419 = vsyncpa [#allocation14], 1

</llo_original>
